<compile_context>
chip_gen: v7x
topology: tpu7x:2x2x1
jax: 0.10.0
libtpu: 0.0.40
codegen_flags: <defaults>
</compile_context>

<pallas_src>
import functools

import jax
import jax.numpy as jnp
from jax.experimental import pallas as pl
from jax.experimental.pallas import tpu as pltpu


def _round_up(x, m):
    return (x + m - 1) // m * m


def ffn_kernel(x_ref, w1_ref, b1_ref, w2_ref, b2_ref, o_ref, acc_ref):
    # x_ref: [tm, d_model]      w1_ref: [d_model, tff]   b1_ref: [1, tff]
    # w2_ref: [tff, d_model]    b2_ref: [1, d_model]
    # o_ref:  [tm, d_model]     acc_ref: [tm, d_model] f32 scratch
    k = pl.program_id(1)

    @pl.when(k == 0)
    def _init():
        acc_ref[...] = jnp.zeros_like(acc_ref)

    # linear1 (this d_ff slice) + bias + ReLU, f32 accumulation on the MXU.
    h = jnp.dot(x_ref[...], w1_ref[...], preferred_element_type=jnp.float32)
    h = jnp.maximum(h + b1_ref[...], 0.0)
    # TODO(synk): training-mode dropout (p=0.1) omitted; inference semantics used.

    # Partial product of linear2 into the f32 accumulator.
    acc_ref[...] += jnp.dot(h.astype(w2_ref.dtype), w2_ref[...],
                            preferred_element_type=jnp.float32)

    @pl.when(k == pl.num_programs(1) - 1)
    def _finalize():
        o_ref[...] = (acc_ref[...] + b2_ref[...]).astype(o_ref.dtype)


def positionwise_feed_forward(x, w1, b1, w2, b2, *, tm=256, tff=512,
                              compute_dtype=jnp.bfloat16):
    """x: [B, S, d_model] -> [B, S, d_model]."""
    B, S, d_model = x.shape
    d_ff = w1.shape[1]
    M = B * S
    out_dtype = x.dtype

    # bf16 MXU operands; biases stay f32 for the f32 epilogue.
    x2d = x.reshape(M, d_model).astype(compute_dtype)
    w1c = w1.astype(compute_dtype)
    w2c = w2.astype(compute_dtype)
    b1_2d = b1.reshape(1, d_ff).astype(jnp.float32)
    b2_2d = b2.reshape(1, d_model).astype(jnp.float32)

    # Tile sizes: sublane-aligned (16 for bf16), lane-dense (full d_model).
    tm = min(tm, _round_up(M, 16))
    tff = min(tff, _round_up(d_ff, 128))

    m_pad = _round_up(M, tm)
    dff_pad = _round_up(d_ff, tff)

    if m_pad != M:
        x2d = jnp.pad(x2d, ((0, m_pad - M), (0, 0)))
    if dff_pad != d_ff:
        # Zero padding is exact: relu(x @ 0 + 0) = 0 contributes nothing.
        w1c = jnp.pad(w1c, ((0, 0), (0, dff_pad - d_ff)))
        b1_2d = jnp.pad(b1_2d, ((0, 0), (0, dff_pad - d_ff)))
        w2c = jnp.pad(w2c, ((0, dff_pad - d_ff), (0, 0)))

    grid = (m_pad // tm, dff_pad // tff)

    itemsize_c = jnp.dtype(compute_dtype).itemsize
    itemsize_o = jnp.dtype(out_dtype).itemsize

    cost = pl.CostEstimate(
        flops=4 * m_pad * d_model * dff_pad,
        transcendentals=0,
        bytes_accessed=int(
            m_pad * d_model * itemsize_c            # x in
            + m_pad * d_model * itemsize_o          # out
            + d_model * dff_pad * itemsize_c * 2    # w1 + w2
            + (dff_pad + d_model) * 4),             # biases
    )

    # VMEM budget: double-buffered tiles + resident weights slice + f32
    # accumulator + [tm, tff] f32 intermediate. Clamp to a v7x-safe limit.
    vmem_est = (2 * tm * d_model * itemsize_c
                + 2 * d_model * tff * itemsize_c
                + 2 * tff * d_model * itemsize_c
                + 2 * (tff + d_model) * 4
                + 2 * tm * d_model * itemsize_o
                + tm * d_model * 4
                + tm * tff * 4)
    vmem_limit = int(min(max(2 * vmem_est, 32 * 1024 * 1024),
                         56 * 1024 * 1024))

    out = pl.pallas_call(
        ffn_kernel,
        out_shape=jax.ShapeDtypeStruct((m_pad, d_model), out_dtype),
        grid_spec=pltpu.PrefetchScalarGridSpec(
            num_scalar_prefetch=0,
            grid=grid,
            in_specs=[
                pl.BlockSpec((tm, d_model), lambda i, k: (i, 0)),   # x tile
                pl.BlockSpec((d_model, tff), lambda i, k: (0, k)),  # w1 slice
                pl.BlockSpec((1, tff), lambda i, k: (0, k)),        # b1 slice
                pl.BlockSpec((tff, d_model), lambda i, k: (k, 0)),  # w2 slice
                pl.BlockSpec((1, d_model), lambda i, k: (0, 0)),    # b2
            ],
            out_specs=pl.BlockSpec((tm, d_model), lambda i, k: (i, 0)),
            scratch_shapes=[pltpu.VMEM((tm, d_model), jnp.float32)],
        ),
        compiler_params=pltpu.CompilerParams(
            dimension_semantics=("parallel", "arbitrary"),
            vmem_limit_bytes=vmem_limit,
        ),
        cost_estimate=cost,
    )(x2d, w1c, b1_2d, w2c, b2_2d)

    return out[:M].reshape(B, S, d_model)


if __name__ == "__main__":
    # Small config consistent with the module (d_model -> d_ff -> d_model).
    # Shapes deliberately exercise M tiling, the d_ff reduction axis, and
    # both padding paths (M=144 with tm=64, d_ff=384 with tff=256).
    B, S = 2, 72
    d_model, d_ff = 128, 384

    key = jax.random.PRNGKey(0)
    kx, kw1, kb1, kw2, kb2 = jax.random.split(key, 5)

    # Deterministic init mimicking nn.Linear default: U(-1/sqrt(fan_in), +)
    bound1 = 1.0 / (d_model ** 0.5)
    bound2 = 1.0 / (d_ff ** 0.5)
    w1 = jax.random.uniform(kw1, (d_model, d_ff), jnp.float32, -bound1, bound1)
    b1 = jax.random.uniform(kb1, (d_ff,), jnp.float32, -bound1, bound1)
    w2 = jax.random.uniform(kw2, (d_ff, d_model), jnp.float32, -bound2, bound2)
    b2 = jax.random.uniform(kb2, (d_model,), jnp.float32, -bound2, bound2)

    x = jax.random.normal(kx, (B, S, d_model), jnp.float32)

    ffn = jax.jit(functools.partial(positionwise_feed_forward, tm=64, tff=256))
    y = jax.block_until_ready(ffn(x, w1, b1, w2, b2))
    assert y.shape == (B, S, d_model)

    # Reference in the same mixed precision (bf16 MXU operands, f32 accum).
    xb = x.reshape(B * S, d_model).astype(jnp.bfloat16)
    h_ref = jnp.dot(xb, w1.astype(jnp.bfloat16),
                    preferred_element_type=jnp.float32) + b1
    h_ref = jnp.maximum(h_ref, 0.0)
    ref = (jnp.dot(h_ref.astype(jnp.bfloat16), w2.astype(jnp.bfloat16),
                   preferred_element_type=jnp.float32) + b2
           ).reshape(B, S, d_model)
    assert jnp.allclose(y, ref, atol=2e-2, rtol=2e-2), "mismatch vs reference"

    # Sanity vs pure-f32 reference (loose tolerance for bf16 operands).
    ref32 = jnp.maximum(x @ w1 + b1, 0.0) @ w2 + b2
    assert jnp.allclose(y, ref32, atol=6e-2, rtol=6e-2), "mismatch vs f32 ref"

    print("KERNEL_OK")
</pallas_src>

<mosaic_0001>
module attributes {stable_mosaic.version = 11 : i64} {
  func.func @ffn_kernel(%arg0: i32, %arg1: i32, %arg2: memref<64x128xbf16, #tpu.memory_space<vmem>>, %arg3: memref<128x256xbf16, #tpu.memory_space<vmem>>, %arg4: memref<1x256xf32, #tpu.memory_space<vmem>>, %arg5: memref<256x128xbf16, #tpu.memory_space<vmem>>, %arg6: memref<1x128xf32, #tpu.memory_space<vmem>>, %arg7: memref<64x128xf32, #tpu.memory_space<vmem>>, %arg8: memref<64x128xf32, #tpu.memory_space<vmem>>) attributes {dimension_semantics = [#tpu.dimension_semantics<parallel>, #tpu.dimension_semantics<arbitrary>], iteration_bounds = array<i64: 3, 2>, scalar_prefetch = 0 : i64, scratch_operands = 1 : i64, tpu.core_type = #tpu.core_type<tc>, window_params = [{transform_indices = @transform_0, window_bounds = array<i64: 64, 128>}, {transform_indices = @transform_1, window_bounds = array<i64: 128, 256>}, {transform_indices = @transform_2, window_bounds = array<i64: 1, 256>}, {transform_indices = @transform_3, window_bounds = array<i64: 256, 128>}, {pipeline_mode = #tpu.pipeline_mode<synchronous>, transform_indices = @transform_4, window_bounds = array<i64: 1, 128>}, {transform_indices = @transform_5, window_bounds = array<i64: 64, 128>}]} {
    %c0_i32 = arith.constant 0 : i32
    %0 = arith.cmpi eq, %arg1, %c0_i32 : i32
    %1 = arith.extui %0 : i1 to i32
    %c0_i32_0 = arith.constant 0 : i32
    %2 = arith.cmpi ne, %1, %c0_i32_0 : i32
    scf.if %2 {
      %cst_15 = arith.constant 0.000000e+00 : f32
      %20 = vector.broadcast %cst_15 : f32 to vector<64x128xf32>
      %c0_16 = arith.constant 0 : index
      %c0_17 = arith.constant 0 : index
      %21 = vector.load %arg8[%c0_16, %c0_17] : memref<64x128xf32, #tpu.memory_space<vmem>>, vector<64x128xf32>
      tpu.vector_store %arg8[%c0_16, %c0_17], %20 {strides = array<i32>} : memref<64x128xf32, #tpu.memory_space<vmem>>, vector<64x128xf32>,
    } else {
    }
    %c0 = arith.constant 0 : index
    %c0_1 = arith.constant 0 : index
    %3 = vector.load %arg2[%c0, %c0_1] : memref<64x128xbf16, #tpu.memory_space<vmem>>, vector<64x128xbf16>
    %c0_2 = arith.constant 0 : index
    %c0_3 = arith.constant 0 : index
    %4 = vector.load %arg3[%c0_2, %c0_3] : memref<128x256xbf16, #tpu.memory_space<vmem>>, vector<128x256xbf16>
    %cst = arith.constant dense<0.000000e+00> : vector<64x256xf32>
    %5 = tpu.matmul %3, %4, %cst {dimension_numbers = #tpu.dot_dimension_numbers<[1], [0], [0], [1], [0, 0, 1, 1], [], []>} : vector<64x128xbf16>, vector<128x256xbf16>, vector<64x256xf32> -> vector<64x256xf32>
    %c0_4 = arith.constant 0 : index
    %c0_5 = arith.constant 0 : index
    %6 = vector.load %arg4[%c0_4, %c0_5] : memref<1x256xf32, #tpu.memory_space<vmem>>, vector<1x256xf32>
    %7 = vector.broadcast %6 : vector<1x256xf32> to vector<64x256xf32>
    %8 = arith.addf %5, %7 : vector<64x256xf32>
    %cst_6 = arith.constant 0.000000e+00 : f32
    %9 = vector.broadcast %cst_6 : f32 to vector<64x256xf32>
    %10 = arith.maximumf %8, %9 : vector<64x256xf32>
    %c0_7 = arith.constant 0 : index
    %c0_8 = arith.constant 0 : index
    %11 = vector.load %arg8[%c0_7, %c0_8] : memref<64x128xf32, #tpu.memory_space<vmem>>, vector<64x128xf32>
    %12 = arith.truncf %10 : vector<64x256xf32> to vector<64x256xbf16>
    %c0_9 = arith.constant 0 : index
    %c0_10 = arith.constant 0 : index
    %13 = vector.load %arg5[%c0_9, %c0_10] : memref<256x128xbf16, #tpu.memory_space<vmem>>, vector<256x128xbf16>
    %cst_11 = arith.constant dense<0.000000e+00> : vector<64x128xf32>
    %14 = tpu.matmul %12, %13, %cst_11 {dimension_numbers = #tpu.dot_dimension_numbers<[1], [0], [0], [1], [0, 0, 1, 1], [], []>} : vector<64x256xbf16>, vector<256x128xbf16>, vector<64x128xf32> -> vector<64x128xf32>
    %15 = arith.addf %11, %14 : vector<64x128xf32>
    %c0_12 = arith.constant 0 : index
    %c0_13 = arith.constant 0 : index
    %16 = vector.load %arg8[%c0_12, %c0_13] : memref<64x128xf32, #tpu.memory_space<vmem>>, vector<64x128xf32>
    tpu.vector_store %arg8[%c0_12, %c0_13], %15 {strides = array<i32>} : memref<64x128xf32, #tpu.memory_space<vmem>>, vector<64x128xf32>,
    %c1_i32 = arith.constant 1 : i32
    %17 = arith.cmpi eq, %arg1, %c1_i32 : i32
    %18 = arith.extui %17 : i1 to i32
    %c0_i32_14 = arith.constant 0 : i32
    %19 = arith.cmpi ne, %18, %c0_i32_14 : i32
    scf.if %19 {
      %c0_15 = arith.constant 0 : index
      %c0_16 = arith.constant 0 : index
      %20 = vector.load %arg8[%c0_15, %c0_16] : memref<64x128xf32, #tpu.memory_space<vmem>>, vector<64x128xf32>
      %c0_17 = arith.constant 0 : index
      %c0_18 = arith.constant 0 : index
      %21 = vector.load %arg6[%c0_17, %c0_18] : memref<1x128xf32, #tpu.memory_space<vmem>>, vector<1x128xf32>
      %22 = vector.broadcast %21 : vector<1x128xf32> to vector<64x128xf32>
      %23 = arith.addf %20, %22 : vector<64x128xf32>
      %c0_19 = arith.constant 0 : index
      %c0_20 = arith.constant 0 : index
      %24 = vector.load %arg7[%c0_19, %c0_20] : memref<64x128xf32, #tpu.memory_space<vmem>>, vector<64x128xf32>
      tpu.vector_store %arg7[%c0_19, %c0_20], %23 {strides = array<i32>} : memref<64x128xf32, #tpu.memory_space<vmem>>, vector<64x128xf32>,
    } else {
    }
    return
  }
  func.func @transform_0(%arg0: i32, %arg1: i32) -> (i32, i32) {
    %c0_i32 = arith.constant 0 : i32
    %c0_i32_0 = arith.constant 0 : i32
    return %arg0, %c0_i32 : i32, i32
  }
  func.func @transform_1(%arg0: i32, %arg1: i32) -> (i32, i32) {
    %c0_i32 = arith.constant 0 : i32
    %c0_i32_0 = arith.constant 0 : i32
    return %c0_i32, %arg1 : i32, i32
  }
  func.func @transform_2(%arg0: i32, %arg1: i32) -> (i32, i32) {
    %c0_i32 = arith.constant 0 : i32
    %c0_i32_0 = arith.constant 0 : i32
    return %c0_i32, %arg1 : i32, i32
  }
  func.func @transform_3(%arg0: i32, %arg1: i32) -> (i32, i32) {
    %c0_i32 = arith.constant 0 : i32
    %c0_i32_0 = arith.constant 0 : i32
    return %arg1, %c0_i32 : i32, i32
  }
  func.func @transform_4(%arg0: i32, %arg1: i32) -> (i32, i32) {
    %c0_i32 = arith.constant 0 : i32
    %c0_i32_0 = arith.constant 0 : i32
    %c0_i32_1 = arith.constant 0 : i32
    return %c0_i32, %c0_i32_0 : i32, i32
  }
  func.func @transform_5(%arg0: i32, %arg1: i32) -> (i32, i32) {
    %c0_i32 = arith.constant 0 : i32
    %c0_i32_0 = arith.constant 0 : i32
    return %arg0, %c0_i32 : i32, i32
  }
}

</mosaic_0001>

<llo_original>
// kernel: positionwise_feed_forward.1
$region0: #{positionwise_feed_forward.1}
  #allocation0 [shape = 'u32[]', space=smem, size = 0x4, offset = 0x4, fixed_abs, tag = 'smem constant byte address 0x4 - core index']
  #allocation1 [shape = 'u32[144,128]{1,0:T(1,128)}', space=vmem, size = 0x12000, scoped, tag = 'internal scratch']
  #allocation2 [shape = 'f32[64,128]{1,0:T(8,128)}', space=vmem, size = 0x8000, scoped, tag = 'scratch operand']
  %s0 = inlined_call_operand.vmem [shape: bf16[192,128], index: 0, kind: input, shape index: {}]
  %s1 = inlined_call_operand.vmem [shape: bf16[128,512], index: 1, kind: input, shape index: {}]
  %s2 = inlined_call_operand.vmem [shape: f32[1,512], index: 2, kind: input, shape index: {}]
  %s3 = inlined_call_operand.vmem [shape: bf16[512,128], index: 3, kind: input, shape index: {}]
  %s4 = inlined_call_operand.vmem [shape: f32[1,128], index: 4, kind: input, shape index: {}]
  %s5 = inlined_call_operand.vmem [shape: f32[192,128], index: 5, kind: output, shape index: {}]
  %s6 = sld [smem:[#allocation0]]
  $region99: #{positionwise_feed_forward.1} parent=0
    _
  %s8 = ssub.s32 1, %s6
  %s9 = scalar_select 0, %s8, %s6
  $region1: #{positionwise_feed_forward.1} parent=0
    #allocation3 [shape = 'u8[131072]{0}', space=vmem, size = 0x20000, scoped, tag = 'input window, operand 1']
    loop: start=0, step=1, limit=8
    $region2: #{positionwise_feed_forward.1} parent=1 // loop_pre_header
      _
    $region3: #{positionwise_feed_forward.1} parent=1 // loop_header
      %s11 = sphi 0, %s15
      %p12 = scmp.ge.s32.totalorder %s11, 8
      %s18 = sphi 0, %s30
      %s19 = sphi 0, %s26
      %s20 = sphi 0, %s18
      %s21 = sphi 0, %s19
      %s22 = sphi 0, %s20
      %s23 = sphi 0, %s21
      %s33 = sphi 0, %s35
      %s36 = sphi 0, %s33
      %s37 = sphi 0, %s36
      %s53 = sphi 0, %s37
      %s59 = sphi 0, %s61
      %s62 = sphi 0, %s59
      %s63 = sphi 0, %s62
      %s79 = sphi 0, %s63
      %s85 = sphi 0, %s87
      %s88 = sphi 0, %s85
      %s89 = sphi 0, %s88
      %s105 = sphi 0, %s89
      %s111 = sphi 0, %s113
      %s114 = sphi 0, %s111
      %s115 = sphi 0, %s114
      %s131 = sphi 0, %s115
      %s135 = sphi 0, %s135
      %s137 = sphi 0, %s135
      %s138 = sphi 0, %s137
      %s152 = sphi 0, %s138
      %s158 = sphi 0, %s160
      %s161 = sphi 0, %s158
      %s162 = sphi 0, %s161
      %s178 = sphi 0, %s162
    $region4: #{positionwise_feed_forward.1} parent=1 // loop_header_branch
      %14 = sbr.rel (%p12) target = $region8
    $region5: #{positionwise_feed_forward.1} parent=1 // loop_body
      %s16 = ssub.s32 %s11, 1
      %s17 = ssub.s32 %s11, 2
      %s24 = sadd.s32 1, %s19
      %p25 = scmp.ge.s32.totalorder %s24, 2
      %s26 = scalar_select %p25, 0, %s24
      %s27 = sadd.s32 1, %s18
      %s28 = scalar_select %p25, %s27, %s18
      %p29 = scmp.ge.s32.totalorder %s28, 3
      %s30 = scalar_select %p29, 0, %s28
      %s31 = ssub.s32 %s18, %s30
      %p32 = scmp.eq.s32.totalorder %s31, 0
      %s34 = sadd.s32 %s33, 1
      %s35 = scalar_select %p32, %s33, %s34
      %p38 = pneg %p32
      %p39 = scmp.eq.s32.totalorder %s11, 5
      %p40 = por %p38, %p39
      %p41 = scmp.ne.s32.totalorder %s33, %s36
      %p42 = scmp.eq.s32.totalorder %s11, 0
      %p43 = por %p41, %p42
      %p44 = scmp.ne.s32.totalorder %s33, %s36
      %p45 = scmp.eq.s32.totalorder %s16, 5
      %p46 = por %p44, %p45
      %p47 = scmp.ne.s32.totalorder %s36, %s37
      %p48 = scmp.eq.s32.totalorder %s16, 0
      %p49 = por %p47, %p48
      %p50 = scmp.ne.s32.totalorder %s36, %s37
      %p51 = scmp.eq.s32.totalorder %s17, 5
      %p52 = por %p50, %p51
      %p54 = scmp.ne.s32.totalorder %s37, %s53
      %p55 = scmp.eq.s32.totalorder %s17, 0
      %p56 = por %p54, %p55
      %s57 = ssub.s32 %s19, %s26
      %p58 = scmp.eq.s32.totalorder %s57, 0
      %s60 = sadd.s32 %s59, 1
      %s61 = scalar_select %p58, %s59, %s60
      %p64 = pneg %p58
      %p65 = scmp.eq.s32.totalorder %s11, 5
      %p66 = por %p64, %p65
      %p67 = scmp.ne.s32.totalorder %s59, %s62
      %p68 = scmp.eq.s32.totalorder %s11, 0
      %p69 = por %p67, %p68
      %p70 = scmp.ne.s32.totalorder %s59, %s62
      %p71 = scmp.eq.s32.totalorder %s16, 5
      %p72 = por %p70, %p71
      %p73 = scmp.ne.s32.totalorder %s62, %s63
      %p74 = scmp.eq.s32.totalorder %s16, 0
      %p75 = por %p73, %p74
      %p76 = scmp.ne.s32.totalorder %s62, %s63
      %p77 = scmp.eq.s32.totalorder %s17, 5
      %p78 = por %p76, %p77
      %p80 = scmp.ne.s32.totalorder %s63, %s79
      %p81 = scmp.eq.s32.totalorder %s17, 0
      %p82 = por %p80, %p81
      %s83 = ssub.s32 %s19, %s26
      %p84 = scmp.eq.s32.totalorder %s83, 0
      %s86 = sadd.s32 %s85, 1
      %s87 = scalar_select %p84, %s85, %s86
      %p90 = pneg %p84
      %p91 = scmp.eq.s32.totalorder %s11, 5
      %p92 = por %p90, %p91
      %p93 = scmp.ne.s32.totalorder %s85, %s88
      %p94 = scmp.eq.s32.totalorder %s11, 0
      %p95 = por %p93, %p94
      %p96 = scmp.ne.s32.totalorder %s85, %s88
      %p97 = scmp.eq.s32.totalorder %s16, 5
      %p98 = por %p96, %p97
      %p99 = scmp.ne.s32.totalorder %s88, %s89
      %p100 = scmp.eq.s32.totalorder %s16, 0
      %p101 = por %p99, %p100
      %p102 = scmp.ne.s32.totalorder %s88, %s89
      %p103 = scmp.eq.s32.totalorder %s17, 5
      %p104 = por %p102, %p103
      %p106 = scmp.ne.s32.totalorder %s89, %s105
      %p107 = scmp.eq.s32.totalorder %s17, 0
      %p108 = por %p106, %p107
      %s109 = ssub.s32 %s19, %s26
      %p110 = scmp.eq.s32.totalorder %s109, 0
      %s112 = sadd.s32 %s111, 1
      %s113 = scalar_select %p110, %s111, %s112
      %p116 = pneg %p110
      %p117 = scmp.eq.s32.totalorder %s11, 5
      %p118 = por %p116, %p117
      %p119 = scmp.ne.s32.totalorder %s111, %s114
      %p120 = scmp.eq.s32.totalorder %s11, 0
      %p121 = por %p119, %p120
      %p122 = scmp.ne.s32.totalorder %s111, %s114
      %p123 = scmp.eq.s32.totalorder %s16, 5
      %p124 = por %p122, %p123
      %p125 = scmp.ne.s32.totalorder %s114, %s115
      %p126 = scmp.eq.s32.totalorder %s16, 0
      %p127 = por %p125, %p126
      %p128 = scmp.ne.s32.totalorder %s114, %s115
      %p129 = scmp.eq.s32.totalorder %s17, 5
      %p130 = por %p128, %p129
      %p132 = scmp.ne.s32.totalorder %s115, %s131
      %p133 = scmp.eq.s32.totalorder %s17, 0
      %p134 = por %p132, %p133
      %s136 = sadd.s32 %s135, 1
      %p139 = scmp.eq.s32.totalorder %s11, 5
      %p140 = scmp.ne.s32.totalorder %s135, %s137
      %p141 = scmp.eq.s32.totalorder %s11, 0
      %p142 = por %p140, %p141
      %p143 = scmp.ne.s32.totalorder %s135, %s137
      %p144 = scmp.eq.s32.totalorder %s16, 5
      %p145 = por %p143, %p144
      %p146 = scmp.ne.s32.totalorder %s137, %s138
      %p147 = scmp.eq.s32.totalorder %s16, 0
      %p148 = por %p146, %p147
      %p149 = scmp.ne.s32.totalorder %s137, %s138
      %p150 = scmp.eq.s32.totalorder %s17, 5
      %p151 = por %p149, %p150
      %p153 = scmp.ne.s32.totalorder %s138, %s152
      %p154 = scmp.eq.s32.totalorder %s17, 0
      %p155 = por %p153, %p154
      %s156 = ssub.s32 %s18, %s30
      %p157 = scmp.eq.s32.totalorder %s156, 0
      %s159 = sadd.s32 %s158, 1
      %s160 = scalar_select %p157, %s158, %s159
      %p163 = pneg %p157
      %p164 = scmp.eq.s32.totalorder %s11, 5
      %p165 = por %p163, %p164
      %p166 = scmp.ne.s32.totalorder %s158, %s161
      %p167 = scmp.eq.s32.totalorder %s11, 0
      %p168 = por %p166, %p167
      %p169 = scmp.ne.s32.totalorder %s158, %s161
      %p170 = scmp.eq.s32.totalorder %s16, 5
      %p171 = por %p169, %p170
      %p172 = scmp.ne.s32.totalorder %s161, %s162
      %p173 = scmp.eq.s32.totalorder %s16, 0
      %p174 = por %p172, %p173
      %p175 = scmp.ne.s32.totalorder %s161, %s162
      %p176 = scmp.eq.s32.totalorder %s17, 5
      %p177 = por %p175, %p176
      %p179 = scmp.ne.s32.totalorder %s162, %s178
      %p180 = scmp.eq.s32.totalorder %s17, 0
      %p181 = por %p179, %p180
      %p182 = scmp.le.s32.totalorder 1, %s11
      %p183 = scmp.lt.s32.totalorder %s11, 7
      %p184 = pnand %p182, %p183
      %p185 = pneg %p184
      // Predicated region
      $region9: #{positionwise_feed_forward.1} parent=5 // pred_check
        _
      $region10: #{positionwise_feed_forward.1} parent=5 // pred_check_branch
        %187 = sbr.rel (%p184) target = $region12
      $region11: #{positionwise_feed_forward.1} parent=5 // pred_region
        %s188 = ssub.s32 %s11, 1
        // Predicated region
        $region13: #{positionwise_feed_forward.1} parent=11 // pred_check
          %p189 = pneg %p148
        $region14: #{positionwise_feed_forward.1} parent=11 // pred_check_branch
          %191 = sbr.rel (%p189) target = $region16
        $region15: #{positionwise_feed_forward.1} parent=11 // pred_region
          _
        $region16: #{positionwise_feed_forward.1} parent=11 // pred_fallthru
          _
      $region12: #{positionwise_feed_forward.1} parent=5 // pred_fallthru
        _
      %p192 = scmp.lt.s32.totalorder %s11, 6
      // Predicated region
      $region17: #{positionwise_feed_forward.1} parent=5 // pred_check
        %p193 = pneg %p192
      $region18: #{positionwise_feed_forward.1} parent=5 // pred_check_branch
        %195 = sbr.rel (%p193) target = $region20
      $region19: #{positionwise_feed_forward.1} parent=5 // pred_region
        // Predicated region
        $region21: #{positionwise_feed_forward.1} parent=19 // pred_check
          %p196 = pneg %p43
        $region22: #{positionwise_feed_forward.1} parent=19 // pred_check_branch
          %198 = sbr.rel (%p196) target = $region24
        $region23: #{positionwise_feed_forward.1} parent=19 // pred_region
          %s199 = smul.u32 8, %s18
          %p200 = scmp.lt.s32.totalorder %s199, 23
          %s201 = scalar_select %p200, %s199, 23
          %s202 = smul.addr %s201, 4
          %s203 = scalar_lea.vmem %s0, %s202
          %s204 = smul.u32 8, %s18
        $region24: #{positionwise_feed_forward.1} parent=19 // pred_fallthru
          _
        // Predicated region
        $region25: #{positionwise_feed_forward.1} parent=19 // pred_check
          %p205 = pneg %p69
        $region26: #{positionwise_feed_forward.1} parent=19 // pred_check_branch
          %207 = sbr.rel (%p205) target = $region28
        $region27: #{positionwise_feed_forward.1} parent=19 // pred_region
          %s208 = sand.u32 %s59, 1
          %s209 = sand.u32 %s59, 1
          %s210 = smul.addr %s209, 128
          %s211 = scalar_lea.vmem [#allocation3], %s210
          %s212 = smul.u32 2, %s19
          %s213 = smul.addr %s212, 4
          %s214 = scalar_lea.vmem %s1, %s213
          // Predicated region
          $region29: #{positionwise_feed_forward.1} parent=27 // pred_check
            _
          $region30: #{positionwise_feed_forward.1} parent=27 // pred_check_branch
            %216 = sbr.rel (0) target = $region32
          $region31: #{positionwise_feed_forward.1} parent=27 // pred_region
            // Predicated region
            $region33: #{positionwise_feed_forward.1} parent=31 // pred_check
              _
            $region34: #{positionwise_feed_forward.1} parent=31 // pred_check_branch
              %218 = sbr.rel (0) target = $region36
            $region35: #{positionwise_feed_forward.1} parent=31 // pred_region
              // Predicated region
              $region48: #{positionwise_feed_forward.1} parent=35 // pred_check
                _
              $region49: #{positionwise_feed_forward.1} parent=35 // pred_check_branch
                %263 = sbr.rel (0) target = $region51
              $region50: #{positionwise_feed_forward.1} parent=35 // pred_region
                loop: start=0, step=1, limit=1
                $region52: #{positionwise_feed_forward.1} parent=50 // loop_pre_header
                  _
                $region53: #{positionwise_feed_forward.1} parent=50 // loop_header
                  %s265 = sphi 0, %s269
                  %p266 = scmp.ge.s32.totalorder %s265, 1
                  %s270 = sphi %s214, %s214
                  %s271 = sphi %s211, %s211
                $region54: #{positionwise_feed_forward.1} parent=50 // loop_header_branch
                  %268 = sbr.rel (%p266) target = $region58
                $region55: #{positionwise_feed_forward.1} parent=50 // loop_body
                  %v272 = vld [vmem:[%s270] sm:$0xff]
                  %273 = vst [vmem:[%s271] sm:$0xff] %v272
                  %v274 = vld [vmem:[%s270 + $0x10] sm:$0xff]
                  %275 = vst [vmem:[%s271 + $0x8] sm:$0xff] %v274
                  %v276 = vld [vmem:[%s270 + $0x20] sm:$0xff]
                  %277 = vst [vmem:[%s271 + $0x10] sm:$0xff] %v276
                  %v278 = vld [vmem:[%s270 + $0x30] sm:$0xff]
                  %279 = vst [vmem:[%s271 + $0x18] sm:$0xff] %v278
                  %v280 = vld [vmem:[%s270 + $0x40] sm:$0xff]
                  %281 = vst [vmem:[%s271 + $0x20] sm:$0xff] %v280
                  %v282 = vld [vmem:[%s270 + $0x50] sm:$0xff]
                  %283 = vst [vmem:[%s271 + $0x28] sm:$0xff] %v282
                  %v284 = vld [vmem:[%s270 + $0x60] sm:$0xff]
                  %285 = vst [vmem:[%s271 + $0x30] sm:$0xff] %v284
                  %v286 = vld [vmem:[%s270 + $0x70] sm:$0xff]
                  %287 = vst [vmem:[%s271 + $0x38] sm:$0xff] %v286
                  %v288 = vld [vmem:[%s270 + $0x80] sm:$0xff]
                  %289 = vst [vmem:[%s271 + $0x40] sm:$0xff] %v288
                  %v290 = vld [vmem:[%s270 + $0x90] sm:$0xff]
                  %291 = vst [vmem:[%s271 + $0x48] sm:$0xff] %v290
                  %v292 = vld [vmem:[%s270 + $0xa0] sm:$0xff]
                  %293 = vst [vmem:[%s271 + $0x50] sm:$0xff] %v292
                  %v294 = vld [vmem:[%s270 + $0xb0] sm:$0xff]
                  %295 = vst [vmem:[%s271 + $0x58] sm:$0xff] %v294
                  %v296 = vld [vmem:[%s270 + $0xc0] sm:$0xff]
                  %297 = vst [vmem:[%s271 + $0x60] sm:$0xff] %v296
                  %v298 = vld [vmem:[%s270 + $0xd0] sm:$0xff]
                  %299 = vst [vmem:[%s271 + $0x68] sm:$0xff] %v298
                  %v300 = vld [vmem:[%s270 + $0xe0] sm:$0xff]
                  %301 = vst [vmem:[%s271 + $0x70] sm:$0xff] %v300
                  %v302 = vld [vmem:[%s270 + $0xf0] sm:$0xff]
                  %303 = vst [vmem:[%s271 + $0x78] sm:$0xff] %v302
                $region56: #{positionwise_feed_forward.1} parent=50 // loop_footer
                  %s269 = sadd.s32 1, %s265
                $region57: #{positionwise_feed_forward.1} parent=50 // loop_footer_branch
                  %264 = sbr.rel target = $region53
                $region58: #{positionwise_feed_forward.1} parent=50 // loop_exit
                  _
              $region51: #{positionwise_feed_forward.1} parent=35 // pred_fallthru
                _
              // Predicated region
              $region59: #{positionwise_feed_forward.1} parent=35 // pred_check
                _
              $region60: #{positionwise_feed_forward.1} parent=35 // pred_check_branch
                %305 = sbr.rel target = $region62
              $region61: #{positionwise_feed_forward.1} parent=35 // pred_region
                _
              $region62: #{positionwise_feed_forward.1} parent=35 // pred_fallthru
                _
            $region36: #{positionwise_feed_forward.1} parent=31 // pred_fallthru
              _
            // Predicated region
            $region37: #{positionwise_feed_forward.1} parent=31 // pred_check
              _
            $region38: #{positionwise_feed_forward.1} parent=31 // pred_check_branch
              %220 = sbr.rel target = $region40
            $region39: #{positionwise_feed_forward.1} parent=31 // pred_region
              loop: start=0, step=1, limit=1
              $region41: #{positionwise_feed_forward.1} parent=39 // loop_pre_header
                _
              $region42: #{positionwise_feed_forward.1} parent=39 // loop_header
                %s223 = sphi 0, %s227
                %p224 = scmp.ge.s32.totalorder %s223, 1
                %s228 = sphi %s214, %s214
                %s229 = sphi %s211, %s211
              $region43: #{positionwise_feed_forward.1} parent=39 // loop_header_branch
                %226 = sbr.rel (%p224) target = $region47
              $region44: #{positionwise_feed_forward.1} parent=39 // loop_body
                %v230 = vld [vmem:[%s228] sm:$0xff]
                %231 = vst [vmem:[%s229] sm:$0xff] %v230
                %v232 = vld [vmem:[%s228 + $0x10] sm:$0xff]
                %233 = vst [vmem:[%s229 + $0x8] sm:$0xff] %v232
                %v234 = vld [vmem:[%s228 + $0x20] sm:$0xff]
                %235 = vst [vmem:[%s229 + $0x10] sm:$0xff] %v234
                %v236 = vld [vmem:[%s228 + $0x30] sm:$0xff]
                %237 = vst [vmem:[%s229 + $0x18] sm:$0xff] %v236
                %v238 = vld [vmem:[%s228 + $0x40] sm:$0xff]
                %239 = vst [vmem:[%s229 + $0x20] sm:$0xff] %v238
                %v240 = vld [vmem:[%s228 + $0x50] sm:$0xff]
                %241 = vst [vmem:[%s229 + $0x28] sm:$0xff] %v240
                %v242 = vld [vmem:[%s228 + $0x60] sm:$0xff]
                %243 = vst [vmem:[%s229 + $0x30] sm:$0xff] %v242
                %v244 = vld [vmem:[%s228 + $0x70] sm:$0xff]
                %245 = vst [vmem:[%s229 + $0x38] sm:$0xff] %v244
                %v246 = vld [vmem:[%s228 + $0x80] sm:$0xff]
                %247 = vst [vmem:[%s229 + $0x40] sm:$0xff] %v246
                %v248 = vld [vmem:[%s228 + $0x90] sm:$0xff]
                %249 = vst [vmem:[%s229 + $0x48] sm:$0xff] %v248
                %v250 = vld [vmem:[%s228 + $0xa0] sm:$0xff]
                %251 = vst [vmem:[%s229 + $0x50] sm:$0xff] %v250
                %v252 = vld [vmem:[%s228 + $0xb0] sm:$0xff]
                %253 = vst [vmem:[%s229 + $0x58] sm:$0xff] %v252
                %v254 = vld [vmem:[%s228 + $0xc0] sm:$0xff]
                %255 = vst [vmem:[%s229 + $0x60] sm:$0xff] %v254
                %v256 = vld [vmem:[%s228 + $0xd0] sm:$0xff]
                %257 = vst [vmem:[%s229 + $0x68] sm:$0xff] %v256
                %v258 = vld [vmem:[%s228 + $0xe0] sm:$0xff]
                %259 = vst [vmem:[%s229 + $0x70] sm:$0xff] %v258
                %v260 = vld [vmem:[%s228 + $0xf0] sm:$0xff]
                %261 = vst [vmem:[%s229 + $0x78] sm:$0xff] %v260
              $region45: #{positionwise_feed_forward.1} parent=39 // loop_footer
                %s227 = sadd.s32 1, %s223
              $region46: #{positionwise_feed_forward.1} parent=39 // loop_footer_branch
                %222 = sbr.rel target = $region42
              $region47: #{positionwise_feed_forward.1} parent=39 // loop_exit
                _
            $region40: #{positionwise_feed_forward.1} parent=31 // pred_fallthru
              _
          $region32: #{positionwise_feed_forward.1} parent=27 // pred_fallthru
            _
          %306 = vnop
        $region28: #{positionwise_feed_forward.1} parent=19 // pred_fallthru
          _
        // Predicated region
        $region63: #{positionwise_feed_forward.1} parent=19 // pred_check
          %p307 = pneg %p95
        $region64: #{positionwise_feed_forward.1} parent=19 // pred_check_branch
          %309 = sbr.rel (%p307) target = $region66
        $region65: #{positionwise_feed_forward.1} parent=19 // pred_region
          %s310 = smul.u32 2, %s19
          %p311 = scmp.lt.s32.totalorder %s310, 3
          %s312 = scalar_select %p311, %s310, 3
          %s313 = scalar_lea.vmem %s2, %s312
          %s314 = smul.u32 2, %s19
        $region66: #{positionwise_feed_forward.1} parent=19 // pred_fallthru
          _
        // Predicated region
        $region67: #{positionwise_feed_forward.1} parent=19 // pred_check
          %p315 = pneg %p121
        $region68: #{positionwise_feed_forward.1} parent=19 // pred_check_branch
          %317 = sbr.rel (%p315) target = $region70
        $region69: #{positionwise_feed_forward.1} parent=19 // pred_region
          %s318 = smul.u32 32, %s19
          %p319 = scmp.lt.s32.totalorder %s318, 63
          %s320 = scalar_select %p319, %s318, 63
          %s321 = smul.addr %s320, 4
          %s322 = scalar_lea.vmem %s3, %s321
          %s323 = smul.u32 32, %s19
        $region70: #{positionwise_feed_forward.1} parent=19 // pred_fallthru
          _
      $region20: #{positionwise_feed_forward.1} parent=5 // pred_fallthru
        _
      %p324 = scmp.le.s32.totalorder 1, %s11
      %p325 = scmp.lt.s32.totalorder %s11, 7
      %p326 = pnand %p324, %p325
      %p327 = pneg %p326
      // Predicated region
      $region71: #{positionwise_feed_forward.1} parent=5 // pred_check
        _
      $region72: #{positionwise_feed_forward.1} parent=5 // pred_check_branch
        %329 = sbr.rel (%p326) target = $region74
      $region73: #{positionwise_feed_forward.1} parent=5 // pred_region
        %s330 = ssub.s32 %s11, 1
        %s331 = sand.u32 %s62, 1
        %s332 = sand.u32 %s62, 1
        %s333 = smul.addr %s332, 128
        %s334 = scalar_lea.vmem [#allocation3], %s333
        // Predicated region
        $region75: #{positionwise_feed_forward.1} parent=73 // pred_check
          %p335 = pneg %p75
        $region76: #{positionwise_feed_forward.1} parent=73 // pred_check_branch
          %337 = sbr.rel (%p335) target = $region78
        $region77: #{positionwise_feed_forward.1} parent=73 // pred_region
          _
        $region78: #{positionwise_feed_forward.1} parent=73 // pred_fallthru
          _
        %s338 = smul.u32 8, %s20
        %p339 = scmp.lt.s32.totalorder %s338, 23
        %s340 = scalar_select %p339, %s338, 23
        %s341 = smul.addr %s340, 4
        %s342 = scalar_lea.vmem %s0, %s341
        %p343 = pneg %p49
        %p344 = pneg %p46
        %s345 = sand.u32 %s62, 1
        %s346 = sand.u32 %s62, 1
        %s347 = smul.addr %s346, 128
        %s348 = scalar_lea.vmem [#allocation3], %s347
        %p349 = pneg %p75
        %p350 = pneg %p72
        %s351 = smul.u32 2, %s21
        %p352 = scmp.lt.s32.totalorder %s351, 3
        %s353 = scalar_select %p352, %s351, 3
        %s354 = scalar_lea.vmem %s2, %s353
        %p355 = pneg %p101
        %p356 = pneg %p98
        %s357 = smul.u32 32, %s21
        %p358 = scmp.lt.s32.totalorder %s357, 63
        %s359 = scalar_select %p358, %s357, 63
        %s360 = smul.addr %s359, 4
        %s361 = scalar_lea.vmem %s3, %s360
        %p362 = pneg %p127
        %p363 = pneg %p124
        %p364 = pneg %p148
        %p365 = pneg %p145
        %p366 = pneg %p174
        %p367 = pneg %p171
        %s368 = smul.u32 8, %s20
        %p369 = scmp.lt.s32.totalorder %s368, 23
        %s370 = scalar_select %p369, %s368, 23
        %s371 = smul.addr %s370, 8
        %s372 = scalar_lea.vmem %s5, %s371
        %s373 = smul.u32 8, %s20
        %p374 = scmp.lt.s32.totalorder %s373, 23
        %s375 = scalar_select %p374, %s373, 23
        %s376 = smul.addr %s375, 4
        %s377 = scalar_lea.vmem %s0, %s376
        %s378 = smul.u32 8, %s20
        %s379 = smul.u32 2, %s21
        %s380 = smul.u32 2, %s21
        %p381 = scmp.lt.s32.totalorder %s380, 3
        %s382 = scalar_select %p381, %s380, 3
        %s383 = scalar_lea.vmem %s2, %s382
        %s384 = smul.u32 2, %s21
        %s385 = smul.u32 32, %s21
        %p386 = scmp.lt.s32.totalorder %s385, 63
        %s387 = scalar_select %p386, %s385, 63
        %s388 = smul.addr %s387, 4
        %s389 = scalar_lea.vmem %s3, %s388
        %s390 = smul.u32 32, %s21
        %s391 = smul.u32 8, %s20
        %p392 = scmp.lt.s32.totalorder %s391, 23
        %s393 = scalar_select %p392, %s391, 23
        %s394 = smul.addr %s393, 8
        %s395 = scalar_lea.vmem %s5, %s394
        %s396 = smul.u32 8, %s20
        %p398 = scmp.eq.s32.totalorder %s21, 0
        // Predicated region
        $region79: #{positionwise_feed_forward.1} parent=73 // pred_check
          %p399 = pneg %p398
        $region80: #{positionwise_feed_forward.1} parent=73 // pred_check_branch
          %401 = sbr.rel (%p399) target = $region82
        $region81: #{positionwise_feed_forward.1} parent=73 // pred_region
          %402 = vst [vmem:[#allocation2] sm:$0xff] 0.0
          %403 = vst [vmem:[#allocation2 + $0x8] sm:$0xff] 0.0
          %404 = vst [vmem:[#allocation2 + $0x10] sm:$0xff] 0.0
          %405 = vst [vmem:[#allocation2 + $0x18] sm:$0xff] 0.0
          %406 = vst [vmem:[#allocation2 + $0x20] sm:$0xff] 0.0
          %407 = vst [vmem:[#allocation2 + $0x28] sm:$0xff] 0.0
          %408 = vst [vmem:[#allocation2 + $0x30] sm:$0xff] 0.0
          %409 = vst [vmem:[#allocation2 + $0x38] sm:$0xff] 0.0
        $region82: #{positionwise_feed_forward.1} parent=73 // pred_fallthru
          _
        %v410 = vld [vmem:[%s377] sm:$0xf]
        %v411 = vld [vmem:[%s377 + $0x4] sm:$0xf]
        %v412 = vld [vmem:[%s377 + $0x8] sm:$0xf]
        %v413 = vld [vmem:[%s377 + $0xc] sm:$0xf]
        %v414 = vld [vmem:[%s377 + $0x10] sm:$0xf]
        %v415 = vld [vmem:[%s377 + $0x14] sm:$0xf]
        %v416 = vld [vmem:[%s377 + $0x18] sm:$0xf]
        %v417 = vld [vmem:[%s377 + $0x1c] sm:$0xf]
        %v418 = vld [vmem:[%s334] sm:$0xff]
        %v419 = vld [vmem:[%s334 + $0x8] sm:$0xff]
        %v420 = vld [vmem:[%s334 + $0x10] sm:$0xff]
        %v421 = vld [vmem:[%s334 + $0x18] sm:$0xff]
        %v422 = vld [vmem:[%s334 + $0x20] sm:$0xff]
        %v423 = vld [vmem:[%s334 + $0x28] sm:$0xff]
        %v424 = vld [vmem:[%s334 + $0x30] sm:$0xff]
        %v425 = vld [vmem:[%s334 + $0x38] sm:$0xff]
        %v426 = vld [vmem:[%s334 + $0x40] sm:$0xff]
        %v427 = vld [vmem:[%s334 + $0x48] sm:$0xff]
        %v428 = vld [vmem:[%s334 + $0x50] sm:$0xff]
        %v429 = vld [vmem:[%s334 + $0x58] sm:$0xff]
        %v430 = vld [vmem:[%s334 + $0x60] sm:$0xff]
        %v431 = vld [vmem:[%s334 + $0x68] sm:$0xff]
        %v432 = vld [vmem:[%s334 + $0x70] sm:$0xff]
        %v433 = vld [vmem:[%s334 + $0x78] sm:$0xff]
        %v434 = vld [vmem:[%s383] sm:$0x3]
        %v436 = vlaneseq
        %v437 = vshrl.u32 %v436, 7
        %v438 = vsub.s32 0, %v437
        %v439 = vrot.slane %v434, %v438
        %v440 = vlaneseq
        %v441 = vshrl.u32 %v440, 7
        %v442 = vsub.s32 1, %v441
        %v443 = vrot.slane %v434, %v442
        %v454 = vunpack.c.l.b16 %v410
        %v455 = vunpack.c.l.b16 %v411
        %v456 = vunpack.c.l.b16 %v412
        %v457 = vunpack.c.l.b16 %v413
        %v458 = vunpack.c.l.b16 %v414
        %v459 = vunpack.c.l.b16 %v415
        %v460 = vunpack.c.l.b16 %v416
        %v461 = vunpack.c.l.b16 %v417
        %v462 = vpack.c.b16 %v455, %v454
        %v463 = vpack.c.b16 %v457, %v456
        %v464 = vpack.c.b16 %v459, %v458
        %v465 = vpack.c.b16 %v461, %v460
        %v486 = vunpack.c.l.b16 %v418
        %v487 = vunpack.c.h.b16 %v418
        %v488 = vunpack.c.l.b16 %v419
        %v489 = vunpack.c.h.b16 %v419
        %v490 = vunpack.c.l.b16 %v420
        %v491 = vunpack.c.h.b16 %v420
        %v492 = vunpack.c.l.b16 %v421
        %v493 = vunpack.c.h.b16 %v421
        %v494 = vunpack.c.l.b16 %v422
        %v495 = vunpack.c.h.b16 %v422
        %v496 = vunpack.c.l.b16 %v423
        %v497 = vunpack.c.h.b16 %v423
        %v498 = vunpack.c.l.b16 %v424
        %v499 = vunpack.c.h.b16 %v424
        %v500 = vunpack.c.l.b16 %v425
        %v501 = vunpack.c.h.b16 %v425
        %v502 = vunpack.c.l.b16 %v426
        %v503 = vunpack.c.h.b16 %v426
        %v504 = vunpack.c.l.b16 %v427
        %v505 = vunpack.c.h.b16 %v427
        %v506 = vunpack.c.l.b16 %v428
        %v507 = vunpack.c.h.b16 %v428
        %v508 = vunpack.c.l.b16 %v429
        %v509 = vunpack.c.h.b16 %v429
        %v510 = vunpack.c.l.b16 %v430
        %v511 = vunpack.c.h.b16 %v430
        %v512 = vunpack.c.l.b16 %v431
        %v513 = vunpack.c.h.b16 %v431
        %v514 = vunpack.c.l.b16 %v432
        %v515 = vunpack.c.h.b16 %v432
        %v516 = vunpack.c.l.b16 %v433
        %v517 = vunpack.c.h.b16 %v433
        %v518 = vpack.c.b16 %v488, %v486
        %v519 = vpack.c.b16 %v489, %v487
        %v520 = vpack.c.b16 %v492, %v490
        %v521 = vpack.c.b16 %v493, %v491
        %v522 = vpack.c.b16 %v496, %v494
        %v523 = vpack.c.b16 %v497, %v495
        %v524 = vpack.c.b16 %v500, %v498
        %v525 = vpack.c.b16 %v501, %v499
        %v526 = vpack.c.b16 %v504, %v502
        %v527 = vpack.c.b16 %v505, %v503
        %v528 = vpack.c.b16 %v508, %v506
        %v529 = vpack.c.b16 %v509, %v507
        %v530 = vpack.c.b16 %v512, %v510
        %v531 = vpack.c.b16 %v513, %v511
        %v532 = vpack.c.b16 %v516, %v514
        %v533 = vpack.c.b16 %v517, %v515
        %550 = vmatprep.subr.bf16.mxu0 %v519
        %551 = vmatpush1.bf16.msra.mxu0 %v518
        %552 = vmatprep.subr.bf16.mxu0 %v521
        %553 = vmatpush1.bf16.msra.mxu0 %v520
        %554 = vmatprep.subr.bf16.mxu0 %v523
        %555 = vmatpush1.bf16.msra.mxu0 %v522
        %556 = vmatprep.subr.bf16.mxu0 %v525
        %557 = vmatpush1.bf16.msra.mxu0 %v524
        %558 = vmatprep.subr.bf16.mxu0 %v527
        %559 = vmatpush1.bf16.msra.mxu0 %v526
        %560 = vmatprep.subr.bf16.mxu0 %v529
        %561 = vmatpush1.bf16.msra.mxu0 %v528
        %562 = vmatprep.subr.bf16.mxu0 %v531
        %563 = vmatpush1.bf16.msra.mxu0 %v530
        %564 = vmatprep.subr.bf16.mxu0 %v533
        %565 = vmatpush1.bf16.msra.mxu0 %v532
        %566 = vmatprep.subr.bf16.mxu0 0
        %567 = vmatpush1.bf16.msra.mxu0 0
        %568 = vmatprep.subr.bf16.mxu0 0
        %569 = vmatpush1.bf16.msra.mxu0 0
        %570 = vmatprep.subr.bf16.mxu0 0
        %571 = vmatpush1.bf16.msra.mxu0 0
        %572 = vmatprep.subr.bf16.mxu0 0
        %573 = vmatpush1.bf16.msra.mxu0 0
        %574 = vmatprep.subr.bf16.mxu0 0
        %575 = vmatpush1.bf16.msra.mxu0 0
        %576 = vmatprep.subr.bf16.mxu0 0
        %577 = vmatpush1.bf16.msra.mxu0 0
        %578 = vmatprep.subr.bf16.mxu0 0
        %579 = vmatpush1.bf16.msra.mxu0 0
        %580 = vmatprep.subr.bf16.mxu0 0
        %581 = vmatpush1.bf16.msra.mxu0 0
        %582 = vmatprep.mubr.bf16.mxu0 0
        %583 = vmatmul.mubr.bf16.gmra.mrb[0].mxu0 %v462
        %v584 = vpop.f32.mrb[0].mxu0
        %v585 = vadd.f32 %v439, %v584
        %v586 = vpop.f32.mrb[0].mxu0
        %v587 = vadd.f32 %v443, %v586
        %v588 = vpop.f32.mrb[0].mxu0
        %v589 = vadd.f32 %v439, %v588
        %v590 = vpop.f32.mrb[0].mxu0
        %v591 = vadd.f32 %v443, %v590
        %592 = vmatprep.mubr.bf16.mxu0 0
        %593 = vmatmul.mubr.bf16.gmra.mrb[0].mxu0 %v463
        %v594 = vpop.f32.mrb[0].mxu0
        %v595 = vadd.f32 %v439, %v594
        %v596 = vpop.f32.mrb[0].mxu0
        %v597 = vadd.f32 %v443, %v596
        %v598 = vpop.f32.mrb[0].mxu0
        %v599 = vadd.f32 %v439, %v598
        %v600 = vpop.f32.mrb[0].mxu0
        %v601 = vadd.f32 %v443, %v600
        %602 = vmatprep.mubr.bf16.mxu0 0
        %603 = vmatmul.mubr.bf16.gmra.mrb[0].mxu0 %v464
        %v604 = vpop.f32.mrb[0].mxu0
        %v605 = vadd.f32 %v439, %v604
        %v606 = vpop.f32.mrb[0].mxu0
        %v607 = vadd.f32 %v443, %v606
        %v608 = vpop.f32.mrb[0].mxu0
        %v609 = vadd.f32 %v439, %v608
        %v610 = vpop.f32.mrb[0].mxu0
        %v611 = vadd.f32 %v443, %v610
        %612 = vmatprep.mubr.bf16.mxu0 0
        %613 = vmatmul.mubr.bf16.gmra.mrb[0].mxu0 %v465
        %v614 = vpop.f32.mrb[0].mxu0
        %v615 = vadd.f32 %v439, %v614
        %v616 = vpop.f32.mrb[0].mxu0
        %v617 = vadd.f32 %v443, %v616
        %v618 = vpop.f32.mrb[0].mxu0
        %v619 = vadd.f32 %v439, %v618
        %v620 = vpop.f32.mrb[0].mxu0
        %v621 = vadd.f32 %v443, %v620
        %622 = vdwg.mxu0
        %v623 = vmax.f32 %v585, 0.0
        %v624 = vmax.f32 %v587, 0.0
        %v625 = vmax.f32 %v589, 0.0
        %v626 = vmax.f32 %v591, 0.0
        %v627 = vmax.f32 %v595, 0.0
        %v628 = vmax.f32 %v597, 0.0
        %v629 = vmax.f32 %v599, 0.0
        %v630 = vmax.f32 %v601, 0.0
        %v631 = vmax.f32 %v605, 0.0
        %v632 = vmax.f32 %v607, 0.0
        %v633 = vmax.f32 %v609, 0.0
        %v634 = vmax.f32 %v611, 0.0
        %v635 = vmax.f32 %v615, 0.0
        %v636 = vmax.f32 %v617, 0.0
        %v637 = vmax.f32 %v619, 0.0
        %v638 = vmax.f32 %v621, 0.0
        %v639 = vld [vmem:[#allocation2] sm:$0xff]
        %v640 = vld [vmem:[#allocation2 + $0x8] sm:$0xff]
        %v641 = vld [vmem:[#allocation2 + $0x10] sm:$0xff]
        %v642 = vld [vmem:[#allocation2 + $0x18] sm:$0xff]
        %v643 = vld [vmem:[#allocation2 + $0x20] sm:$0xff]
        %v644 = vld [vmem:[#allocation2 + $0x28] sm:$0xff]
        %v645 = vld [vmem:[#allocation2 + $0x30] sm:$0xff]
        %v646 = vld [vmem:[#allocation2 + $0x38] sm:$0xff]
        %v647 = vpack.c.bf16 %v625, %v623
        %v648 = vpack.c.bf16 %v626, %v624
        %v649 = vpack.c.bf16 %v629, %v627
        %v650 = vpack.c.bf16 %v630, %v628
        %v651 = vpack.c.bf16 %v633, %v631
        %v652 = vpack.c.bf16 %v634, %v632
        %v653 = vpack.c.bf16 %v637, %v635
        %v654 = vpack.c.bf16 %v638, %v636
        %v655 = vld [vmem:[%s389] sm:$0xf]
        %v656 = vld [vmem:[%s389 + $0x4] sm:$0xf]
        %v657 = vld [vmem:[%s389 + $0x8] sm:$0xf]
        %v658 = vld [vmem:[%s389 + $0xc] sm:$0xf]
        %v659 = vld [vmem:[%s389 + $0x10] sm:$0xf]
        %v660 = vld [vmem:[%s389 + $0x14] sm:$0xf]
        %v661 = vld [vmem:[%s389 + $0x18] sm:$0xf]
        %v662 = vld [vmem:[%s389 + $0x1c] sm:$0xf]
        %v663 = vld [vmem:[%s389 + $0x20] sm:$0xf]
        %v664 = vld [vmem:[%s389 + $0x24] sm:$0xf]
        %v665 = vld [vmem:[%s389 + $0x28] sm:$0xf]
        %v666 = vld [vmem:[%s389 + $0x2c] sm:$0xf]
        %v667 = vld [vmem:[%s389 + $0x30] sm:$0xf]
        %v668 = vld [vmem:[%s389 + $0x34] sm:$0xf]
        %v669 = vld [vmem:[%s389 + $0x38] sm:$0xf]
        %v670 = vld [vmem:[%s389 + $0x3c] sm:$0xf]
        %v671 = vld [vmem:[%s389 + $0x40] sm:$0xf]
        %v672 = vld [vmem:[%s389 + $0x44] sm:$0xf]
        %v673 = vld [vmem:[%s389 + $0x48] sm:$0xf]
        %v674 = vld [vmem:[%s389 + $0x4c] sm:$0xf]
        %v675 = vld [vmem:[%s389 + $0x50] sm:$0xf]
        %v676 = vld [vmem:[%s389 + $0x54] sm:$0xf]
        %v677 = vld [vmem:[%s389 + $0x58] sm:$0xf]
        %v678 = vld [vmem:[%s389 + $0x5c] sm:$0xf]
        %v679 = vld [vmem:[%s389 + $0x60] sm:$0xf]
        %v680 = vld [vmem:[%s389 + $0x64] sm:$0xf]
        %v681 = vld [vmem:[%s389 + $0x68] sm:$0xf]
        %v682 = vld [vmem:[%s389 + $0x6c] sm:$0xf]
        %v683 = vld [vmem:[%s389 + $0x70] sm:$0xf]
        %v684 = vld [vmem:[%s389 + $0x74] sm:$0xf]
        %v685 = vld [vmem:[%s389 + $0x78] sm:$0xf]
        %v686 = vld [vmem:[%s389 + $0x7c] sm:$0xf]
        %v719 = vunpack.c.l.b16 %v655
        %v720 = vunpack.c.l.b16 %v656
        %v721 = vunpack.c.l.b16 %v657
        %v722 = vunpack.c.l.b16 %v658
        %v723 = vunpack.c.l.b16 %v659
        %v724 = vunpack.c.l.b16 %v660
        %v725 = vunpack.c.l.b16 %v661
        %v726 = vunpack.c.l.b16 %v662
        %v727 = vunpack.c.l.b16 %v663
        %v728 = vunpack.c.l.b16 %v664
        %v729 = vunpack.c.l.b16 %v665
        %v730 = vunpack.c.l.b16 %v666
        %v731 = vunpack.c.l.b16 %v667
        %v732 = vunpack.c.l.b16 %v668
        %v733 = vunpack.c.l.b16 %v669
        %v734 = vunpack.c.l.b16 %v670
        %v735 = vunpack.c.l.b16 %v671
        %v736 = vunpack.c.l.b16 %v672
        %v737 = vunpack.c.l.b16 %v673
        %v738 = vunpack.c.l.b16 %v674
        %v739 = vunpack.c.l.b16 %v675
        %v740 = vunpack.c.l.b16 %v676
        %v741 = vunpack.c.l.b16 %v677
        %v742 = vunpack.c.l.b16 %v678
        %v743 = vunpack.c.l.b16 %v679
        %v744 = vunpack.c.l.b16 %v680
        %v745 = vunpack.c.l.b16 %v681
        %v746 = vunpack.c.l.b16 %v682
        %v747 = vunpack.c.l.b16 %v683
        %v748 = vunpack.c.l.b16 %v684
        %v749 = vunpack.c.l.b16 %v685
        %v750 = vunpack.c.l.b16 %v686
        %v751 = vpack.c.b16 %v720, %v719
        %v752 = vpack.c.b16 %v722, %v721
        %v753 = vpack.c.b16 %v724, %v723
        %v754 = vpack.c.b16 %v726, %v725
        %v755 = vpack.c.b16 %v728, %v727
        %v756 = vpack.c.b16 %v730, %v729
        %v757 = vpack.c.b16 %v732, %v731
        %v758 = vpack.c.b16 %v734, %v733
        %v759 = vpack.c.b16 %v736, %v735
        %v760 = vpack.c.b16 %v738, %v737
        %v761 = vpack.c.b16 %v740, %v739
        %v762 = vpack.c.b16 %v742, %v741
        %v763 = vpack.c.b16 %v744, %v743
        %v764 = vpack.c.b16 %v746, %v745
        %v765 = vpack.c.b16 %v748, %v747
        %v766 = vpack.c.b16 %v750, %v749
        %783 = vmatprep.subr.bf16.mxu0 0
        %784 = vmatpush1.bf16.msra.mxu0 %v751
        %785 = vmatprep.subr.bf16.mxu0 0
        %786 = vmatpush1.bf16.msra.mxu0 %v752
        %787 = vmatprep.subr.bf16.mxu0 0
        %788 = vmatpush1.bf16.msra.mxu0 %v753
        %789 = vmatprep.subr.bf16.mxu0 0
        %790 = vmatpush1.bf16.msra.mxu0 %v754
        %791 = vmatprep.subr.bf16.mxu0 0
        %792 = vmatpush1.bf16.msra.mxu0 %v755
        %793 = vmatprep.subr.bf16.mxu0 0
        %794 = vmatpush1.bf16.msra.mxu0 %v756
        %795 = vmatprep.subr.bf16.mxu0 0
        %796 = vmatpush1.bf16.msra.mxu0 %v757
        %797 = vmatprep.subr.bf16.mxu0 0
        %798 = vmatpush1.bf16.msra.mxu0 %v758
        %799 = vmatprep.subr.bf16.mxu0 0
        %800 = vmatpush1.bf16.msra.mxu0 %v759
        %801 = vmatprep.subr.bf16.mxu0 0
        %802 = vmatpush1.bf16.msra.mxu0 %v760
        %803 = vmatprep.subr.bf16.mxu0 0
        %804 = vmatpush1.bf16.msra.mxu0 %v761
        %805 = vmatprep.subr.bf16.mxu0 0
        %806 = vmatpush1.bf16.msra.mxu0 %v762
        %807 = vmatprep.subr.bf16.mxu0 0
        %808 = vmatpush1.bf16.msra.mxu0 %v763
        %809 = vmatprep.subr.bf16.mxu0 0
        %810 = vmatpush1.bf16.msra.mxu0 %v764
        %811 = vmatprep.subr.bf16.mxu0 0
        %812 = vmatpush1.bf16.msra.mxu0 %v765
        %813 = vmatprep.subr.bf16.mxu0 0
        %814 = vmatpush1.bf16.msra.mxu0 %v766
        %815 = vmatprep.mubr.bf16.mxu0 %v648
        %816 = vmatmul.mubr.bf16.gmra.mrb[0].mxu0 %v647
        %v817 = vpop.f32.mrb[0].mxu0
        %v818 = vadd.f32 0.0, %v817
        %v819 = vpop.f32.mrb[0].mxu0
        %v820 = vpop.f32.mrb[0].mxu0
        %v821 = vadd.f32 0.0, %v820
        %v822 = vpop.f32.mrb[0].mxu0
        %823 = vmatprep.mubr.bf16.mxu0 %v650
        %824 = vmatmul.mubr.bf16.gmra.mrb[0].mxu0 %v649
        %v825 = vpop.f32.mrb[0].mxu0
        %v826 = vadd.f32 0.0, %v825
        %v827 = vpop.f32.mrb[0].mxu0
        %v828 = vpop.f32.mrb[0].mxu0
        %v829 = vadd.f32 0.0, %v828
        %v830 = vpop.f32.mrb[0].mxu0
        %831 = vmatprep.mubr.bf16.mxu0 %v652
        %832 = vmatmul.mubr.bf16.gmra.mrb[0].mxu0 %v651
        %v833 = vpop.f32.mrb[0].mxu0
        %v834 = vadd.f32 0.0, %v833
        %v835 = vpop.f32.mrb[0].mxu0
        %v836 = vpop.f32.mrb[0].mxu0
        %v837 = vadd.f32 0.0, %v836
        %v838 = vpop.f32.mrb[0].mxu0
        %839 = vmatprep.mubr.bf16.mxu0 %v654
        %840 = vmatmul.mubr.bf16.gmra.mrb[0].mxu0 %v653
        %v841 = vpop.f32.mrb[0].mxu0
        %v842 = vadd.f32 0.0, %v841
        %v843 = vpop.f32.mrb[0].mxu0
        %v844 = vpop.f32.mrb[0].mxu0
        %v845 = vadd.f32 0.0, %v844
        %v846 = vpop.f32.mrb[0].mxu0
        %847 = vdwg.mxu0
        %v848 = vadd.f32 %v639, %v818
        %v849 = vadd.f32 %v640, %v821
        %v850 = vadd.f32 %v641, %v826
        %v851 = vadd.f32 %v642, %v829
        %v852 = vadd.f32 %v643, %v834
        %v853 = vadd.f32 %v644, %v837
        %v854 = vadd.f32 %v645, %v842
        %v855 = vadd.f32 %v646, %v845
        %856 = vst [vmem:[#allocation2] sm:$0xff] %v848
        %857 = vst [vmem:[#allocation2 + $0x8] sm:$0xff] %v849
        %858 = vst [vmem:[#allocation2 + $0x10] sm:$0xff] %v850
        %859 = vst [vmem:[#allocation2 + $0x18] sm:$0xff] %v851
        %860 = vst [vmem:[#allocation2 + $0x20] sm:$0xff] %v852
        %861 = vst [vmem:[#allocation2 + $0x28] sm:$0xff] %v853
        %862 = vst [vmem:[#allocation2 + $0x30] sm:$0xff] %v854
        %863 = vst [vmem:[#allocation2 + $0x38] sm:$0xff] %v855
        %p864 = scmp.eq.s32.totalorder %s21, 1
        // Predicated region
        $region83: #{positionwise_feed_forward.1} parent=73 // pred_check
          %p865 = pneg %p864
        $region84: #{positionwise_feed_forward.1} parent=73 // pred_check_branch
          %867 = sbr.rel (%p865) target = $region86
        $region85: #{positionwise_feed_forward.1} parent=73 // pred_region
          %v868 = vld [vmem:[#allocation2] sm:$0xff]
          %v869 = vld [vmem:[#allocation2 + $0x8] sm:$0xff]
          %v870 = vld [vmem:[#allocation2 + $0x10] sm:$0xff]
          %v871 = vld [vmem:[#allocation2 + $0x18] sm:$0xff]
          %v872 = vld [vmem:[#allocation2 + $0x20] sm:$0xff]
          %v873 = vld [vmem:[#allocation2 + $0x28] sm:$0xff]
          %v874 = vld [vmem:[#allocation2 + $0x30] sm:$0xff]
          %v875 = vld [vmem:[#allocation2 + $0x38] sm:$0xff]
          %v876 = vld [vmem:[%s4] sm:$0x1]
          %v878 = vlaneseq
          %v879 = vshrl.u32 %v878, 7
          %v880 = vsub.s32 0, %v879
          %v881 = vrot.slane %v876, %v880
          %v883 = vadd.f32 %v868, %v881
          %v884 = vadd.f32 %v869, %v881
          %v885 = vadd.f32 %v870, %v881
          %v886 = vadd.f32 %v871, %v881
          %v887 = vadd.f32 %v872, %v881
          %v888 = vadd.f32 %v873, %v881
          %v889 = vadd.f32 %v874, %v881
          %v890 = vadd.f32 %v875, %v881
          %891 = vst [vmem:[%s395] sm:$0xff] %v883
          %892 = vst [vmem:[%s395 + $0x8] sm:$0xff] %v884
          %893 = vst [vmem:[%s395 + $0x10] sm:$0xff] %v885
          %894 = vst [vmem:[%s395 + $0x18] sm:$0xff] %v886
          %895 = vst [vmem:[%s395 + $0x20] sm:$0xff] %v887
          %896 = vst [vmem:[%s395 + $0x28] sm:$0xff] %v888
          %897 = vst [vmem:[%s395 + $0x30] sm:$0xff] %v889
          %898 = vst [vmem:[%s395 + $0x38] sm:$0xff] %v890
        $region86: #{positionwise_feed_forward.1} parent=73 // pred_fallthru
          _
        %s899 = smul.u32 8, %s20
        %p900 = scmp.lt.s32.totalorder %s899, 23
        %s901 = scalar_select %p900, %s899, 23
        %s902 = smul.addr %s901, 8
        %s903 = scalar_lea.vmem %s5, %s902
        // Predicated region
        $region87: #{positionwise_feed_forward.1} parent=73 // pred_check
          %p904 = pneg %p171
        $region88: #{positionwise_feed_forward.1} parent=73 // pred_check_branch
          %906 = sbr.rel (%p904) target = $region90
        $region89: #{positionwise_feed_forward.1} parent=73 // pred_region
          %s907 = smul.u32 8, %s20
        $region90: #{positionwise_feed_forward.1} parent=73 // pred_fallthru
          _
      $region74: #{positionwise_feed_forward.1} parent=5 // pred_fallthru
        _
      %p908 = scmp.le.s32.totalorder 2, %s11
      // Predicated region
      $region91: #{positionwise_feed_forward.1} parent=5 // pred_check
        %p909 = pneg %p908
      $region92: #{positionwise_feed_forward.1} parent=5 // pred_check_branch
        %911 = sbr.rel (%p909) target = $region94
      $region93: #{positionwise_feed_forward.1} parent=5 // pred_region
        %s912 = ssub.s32 %s11, 2
        // Predicated region
        $region95: #{positionwise_feed_forward.1} parent=93 // pred_check
          %p913 = pneg %p177
        $region96: #{positionwise_feed_forward.1} parent=93 // pred_check_branch
          %915 = sbr.rel (%p913) target = $region98
        $region97: #{positionwise_feed_forward.1} parent=93 // pred_region
          %s916 = smul.u32 8, %s22
          %p917 = scmp.lt.s32.totalorder %s916, 23
          %s918 = scalar_select %p917, %s916, 23
          %s919 = smul.addr %s918, 8
          %s920 = scalar_lea.vmem %s5, %s919
        $region98: #{positionwise_feed_forward.1} parent=93 // pred_fallthru
          _
      $region94: #{positionwise_feed_forward.1} parent=5 // pred_fallthru
        _
    $region6: #{positionwise_feed_forward.1} parent=1 // loop_footer
      %s15 = sadd.s32 1, %s11
    $region7: #{positionwise_feed_forward.1} parent=1 // loop_footer_branch
      %10 = sbr.rel target = $region3
    $region8: #{positionwise_feed_forward.1} parent=1 // loop_exit
      _

</llo_original>
